<compile_context>
chip_gen: v7x
topology: tpu7x:2x2x1
jax: 0.10.0
libtpu: 0.0.40
codegen_flags: <defaults>
</compile_context>

<pallas_src>
import functools

import jax
import jax.numpy as jnp
import numpy as np
from jax import lax
from jax.experimental import pallas as pl
from jax.experimental.pallas import tpu as pltpu


def _dilconv_kernel(x_ref, weff_ref, mask_ref, scale_ref, bias_ref, out_ref,
                    patch_ref, *, KH, KW, C_in, W_img, HW, dilation, padding,
                    pad_left):
    """One batch element, fully lane-dense.

    x_ref:     (1, C_in, L)         flattened NCHW input, zero-padded by
                                    pad_left on each side of the flat axis
    weff_ref:  (C_out, KH*KW*C_in)  fused depthwise*pointwise weight
    mask_ref:  (KW, HW)             per-kw column validity masks (1.0 / 0.0)
    scale_ref: (C_out, 1)           folded BN scale  (gamma / sqrt(var+eps))
    bias_ref:  (C_out, 1)           folded BN bias   (beta - mean*scale)
    out_ref:   (1, C_out, HW)       lane-dense output block
    patch_ref: (KH*KW*C_in, HW)     VMEM scratch: im2col patch matrix
    """
    # Hoist the per-kw column masks (re-used KH times each below).
    col_masks = [mask_ref[kw:kw + 1, :] for kw in range(KW)]

    # Build the im2col patch matrix: each dilated tap is a statically shifted
    # lane window of the flattened padded input.
    for kh in range(KH):
        for kw in range(KW):
            tap = kh * KW + kw
            off = (pad_left + (kh * dilation - padding) * W_img
                   + (kw * dilation - padding))
            v = x_ref[0, :, off:off + HW]            # (C_in, HW) shifted window
            v = jnp.maximum(v, 0.0)                  # ReLU (pad zeros stay 0)
            if kw * dilation - padding != 0:         # cancel horizontal wrap
                v = v * col_masks[kw]
            patch_ref[tap * C_in:(tap + 1) * C_in, :] = v

    # Fused depthwise + pointwise conv as a single MXU matmul (K = KH*KW*C_in,
    # N = H*W = 256).  Production note: cast operands to bf16 for v5e/v6e/v7x
    # MXU peak at realistic channel counts; kept f32 here to hold 1e-4 accuracy.
    y = jnp.dot(weff_ref[...], patch_ref[...],
                preferred_element_type=jnp.float32)  # (C_out, HW)

    # Folded BatchNorm (inference) epilogue, then one dense (C_out, HW) store.
    y = y * scale_ref[...] + bias_ref[...]
    out_ref[0] = y.astype(out_ref.dtype)


def dil_conv(x_nchw, w_dw, w_pw, gamma, beta, run_mean, run_var,
             *, stride=1, padding=2, dilation=2, eps=1e-5):
    """DilConv forward.

    x_nchw: (N, C_in, H, W)      float32
    w_dw:   (C_in, 1, KH, KW)    depthwise conv weight (PyTorch layout)
    w_pw:   (C_out, C_in, 1, 1)  pointwise conv weight (PyTorch layout)
    gamma/beta/run_mean/run_var: (C_out,)
    returns: (N, C_out, H_out, W_out)
    """
    N, C_in, H, W = x_nchw.shape
    C_out = w_pw.shape[0]
    KH, KW = w_dw.shape[2], w_dw.shape[3]
    H_out = (H + 2 * padding - dilation * (KH - 1) - 1) // stride + 1
    W_out = (W + 2 * padding - dilation * (KW - 1) - 1) // stride + 1

    if stride != 1 or H_out != H or W_out != W:
        # TODO(synk): general stride / non-'same' padding needs a 2-D row-tiled
        # variant; the config used here (k=3, pad=2, dil=2, stride=1) is 'same'.
        raise NotImplementedError("dil_conv kernel supports stride=1 'same' convs")

    HW = H * W
    pad_flat = padding * W + padding          # covers the most negative tap offset
    L = HW + 2 * pad_flat

    # NCHW kept end-to-end: only a free reshape + small zero-pad (no transposes).
    x_flat = jnp.pad(x_nchw.reshape(N, C_in, HW),
                     ((0, 0), (0, 0), (pad_flat, pad_flat)))

    # Fused effective weight: w_eff[co, tap*C_in + ci] = wdw[ci,kh,kw] * wpw[co,ci].
    wdw = jnp.transpose(w_dw[:, 0, :, :], (1, 2, 0)).reshape(KH * KW, C_in)
    wpw = w_pw[:, :, 0, 0]                                         # (C_out, C_in)
    w_eff = (wdw[None, :, :] * wpw[:, None, :]).reshape(C_out, KH * KW * C_in)

    # Per-kw column-validity masks (cancel horizontal wrap of the flat shifts).
    col = jnp.arange(HW, dtype=jnp.int32) % W
    col_mask = jnp.stack(
        [((col + (kw * dilation - padding) >= 0)
          & (col + (kw * dilation - padding) < W)).astype(x_nchw.dtype)
         for kw in range(KW)], axis=0)                             # (KW, HW)

    # Folded BatchNorm (inference form).
    scale = (gamma / jnp.sqrt(run_var + eps)).reshape(C_out, 1)
    bias = beta.reshape(C_out, 1) - run_mean.reshape(C_out, 1) * scale

    kernel = functools.partial(
        _dilconv_kernel, KH=KH, KW=KW, C_in=C_in, W_img=W, HW=HW,
        dilation=dilation, padding=padding, pad_left=pad_flat)

    out_flat = pl.pallas_call(
        kernel,
        out_shape=jax.ShapeDtypeStruct((N, C_out, HW), x_nchw.dtype),
        grid_spec=pltpu.PrefetchScalarGridSpec(
            num_scalar_prefetch=0,
            grid=(N,),
            in_specs=[
                pl.BlockSpec((1, C_in, L), lambda b: (b, 0, 0)),
                pl.BlockSpec((C_out, KH * KW * C_in), lambda b: (0, 0)),
                pl.BlockSpec((KW, HW), lambda b: (0, 0)),
                pl.BlockSpec((C_out, 1), lambda b: (0, 0)),
                pl.BlockSpec((C_out, 1), lambda b: (0, 0)),
            ],
            out_specs=pl.BlockSpec((1, C_out, HW), lambda b: (b, 0, 0)),
            scratch_shapes=[pltpu.VMEM((KH * KW * C_in, HW), jnp.float32)],
        ),
        compiler_params=pltpu.CompilerParams(
            dimension_semantics=("parallel",)),
    )(x_flat, w_eff, col_mask, scale, bias)

    # Free metadata reshape back to NCHW spatial form.
    return out_flat.reshape(N, C_out, H_out, W_out)


def _reference(x, w_dw, w_pw, gamma, beta, run_mean, run_var,
               *, stride, padding, dilation, eps=1e-5):
    """Pure-JAX reference mirroring the PyTorch module (BN in inference form)."""
    C_in = x.shape[1]
    h = jnp.maximum(x, 0.0)
    h = lax.conv_general_dilated(
        h, w_dw, window_strides=(stride, stride),
        padding=[(padding, padding), (padding, padding)],
        rhs_dilation=(dilation, dilation),
        feature_group_count=C_in,
        dimension_numbers=("NCHW", "OIHW", "NCHW"))
    h = lax.conv_general_dilated(
        h, w_pw, window_strides=(1, 1), padding=[(0, 0), (0, 0)],
        dimension_numbers=("NCHW", "OIHW", "NCHW"))
    scale = gamma / jnp.sqrt(run_var + eps)
    bias = beta - run_mean * scale
    return h * scale[None, :, None, None] + bias[None, :, None, None]


if __name__ == "__main__":
    # DilConv(C_in=4, C_out=8, kernel_size=3, stride=1, padding=2, dilation=2).
    N, C_in, C_out, H, W = 2, 4, 8, 16, 16
    KH = KW = 3
    stride, padding, dilation = 1, 2, 2

    key = jax.random.PRNGKey(0)
    kx, kdw, kpw, kg, kb, km, kv = jax.random.split(key, 7)

    x = jax.random.normal(kx, (N, C_in, H, W), dtype=jnp.float32)
    w_dw = jax.random.normal(kdw, (C_in, 1, KH, KW), dtype=jnp.float32) * 0.2
    w_pw = jax.random.normal(kpw, (C_out, C_in, 1, 1), dtype=jnp.float32) * 0.2
    gamma = 1.0 + 0.1 * jax.random.normal(kg, (C_out,), dtype=jnp.float32)
    beta = 0.1 * jax.random.normal(kb, (C_out,), dtype=jnp.float32)
    run_mean = 0.1 * jax.random.normal(km, (C_out,), dtype=jnp.float32)
    run_var = jnp.abs(1.0 + 0.1 * jax.random.normal(kv, (C_out,), dtype=jnp.float32))

    out = dil_conv(x, w_dw, w_pw, gamma, beta, run_mean, run_var,
                   stride=stride, padding=padding, dilation=dilation)
    out = jax.block_until_ready(out)

    ref = _reference(x, w_dw, w_pw, gamma, beta, run_mean, run_var,
                     stride=stride, padding=padding, dilation=dilation)
    np.testing.assert_allclose(np.asarray(out), np.asarray(ref),
                               rtol=1e-4, atol=1e-4)
    print("KERNEL_OK")
</pallas_src>

<mosaic_0001>
module attributes {stable_mosaic.version = 11 : i64} {
  func.func @_dilconv_kernel(%arg0: i32, %arg1: memref<1x4x324xf32, #tpu.memory_space<vmem>>, %arg2: memref<8x36xf32, #tpu.memory_space<vmem>>, %arg3: memref<3x256xf32, #tpu.memory_space<vmem>>, %arg4: memref<8x1xf32, #tpu.memory_space<vmem>>, %arg5: memref<8x1xf32, #tpu.memory_space<vmem>>, %arg6: memref<1x8x256xf32, #tpu.memory_space<vmem>>, %arg7: memref<36x256xf32, #tpu.memory_space<vmem>>) attributes {dimension_semantics = [#tpu.dimension_semantics<parallel>], iteration_bounds = array<i64: 2>, scalar_prefetch = 0 : i64, scratch_operands = 1 : i64, tpu.core_type = #tpu.core_type<tc>, window_params = [{transform_indices = @transform_0, window_bounds = array<i64: 1, 4, 324>}, {pipeline_mode = #tpu.pipeline_mode<synchronous>, transform_indices = @transform_1, window_bounds = array<i64: 8, 36>}, {pipeline_mode = #tpu.pipeline_mode<synchronous>, transform_indices = @transform_2, window_bounds = array<i64: 3, 256>}, {pipeline_mode = #tpu.pipeline_mode<synchronous>, transform_indices = @transform_3, window_bounds = array<i64: 8, 1>}, {pipeline_mode = #tpu.pipeline_mode<synchronous>, transform_indices = @transform_4, window_bounds = array<i64: 8, 1>}, {transform_indices = @transform_5, window_bounds = array<i64: 1, 8, 256>}]} {
    %c0 = arith.constant 0 : index
    %c0_0 = arith.constant 0 : index
    %0 = vector.load %arg3[%c0, %c0_0] : memref<3x256xf32, #tpu.memory_space<vmem>>, vector<1x256xf32>
    %c2 = arith.constant 2 : index
    %c0_1 = arith.constant 0 : index
    %1 = vector.load %arg3[%c2, %c0_1] : memref<3x256xf32, #tpu.memory_space<vmem>>, vector<1x256xf32>
    %c0_2 = arith.constant 0 : index
    %c0_3 = arith.constant 0 : index
    %c0_4 = arith.constant 0 : index
    %2 = vector.load %arg1[%c0_2, %c0_3, %c0_4] : memref<1x4x324xf32, #tpu.memory_space<vmem>>, vector<1x4x256xf32>
    %3 = vector.shape_cast %2 : vector<1x4x256xf32> to vector<4x256xf32>
    %cst = arith.constant 0.000000e+00 : f32
    %4 = vector.broadcast %cst : f32 to vector<4x256xf32>
    %5 = arith.maximumf %3, %4 : vector<4x256xf32>
    %6 = vector.broadcast %0 : vector<1x256xf32> to vector<4x256xf32>
    %7 = arith.mulf %5, %6 : vector<4x256xf32>
    %c0_5 = arith.constant 0 : index
    %c0_6 = arith.constant 0 : index
    %8 = vector.load %arg7[%c0_5, %c0_6] : memref<36x256xf32, #tpu.memory_space<vmem>>, vector<4x256xf32>
    tpu.vector_store %arg7[%c0_5, %c0_6], %7 {strides = array<i32>} : memref<36x256xf32, #tpu.memory_space<vmem>>, vector<4x256xf32>,
    %c0_7 = arith.constant 0 : index
    %c0_8 = arith.constant 0 : index
    %c2_9 = arith.constant 2 : index
    %9 = vector.load %arg1[%c0_7, %c0_8, %c2_9] : memref<1x4x324xf32, #tpu.memory_space<vmem>>, vector<1x4x256xf32>
    %10 = vector.shape_cast %9 : vector<1x4x256xf32> to vector<4x256xf32>
    %cst_10 = arith.constant 0.000000e+00 : f32
    %11 = vector.broadcast %cst_10 : f32 to vector<4x256xf32>
    %12 = arith.maximumf %10, %11 : vector<4x256xf32>
    %c4 = arith.constant 4 : index
    %c0_11 = arith.constant 0 : index
    %13 = vector.load %arg7[%c4, %c0_11] : memref<36x256xf32, #tpu.memory_space<vmem>>, vector<4x256xf32>
    tpu.vector_store %arg7[%c4, %c0_11], %12 {strides = array<i32>} : memref<36x256xf32, #tpu.memory_space<vmem>>, vector<4x256xf32>,
    %c0_12 = arith.constant 0 : index
    %c0_13 = arith.constant 0 : index
    %c4_14 = arith.constant 4 : index
    %14 = vector.load %arg1[%c0_12, %c0_13, %c4_14] : memref<1x4x324xf32, #tpu.memory_space<vmem>>, vector<1x4x256xf32>
    %15 = vector.shape_cast %14 : vector<1x4x256xf32> to vector<4x256xf32>
    %cst_15 = arith.constant 0.000000e+00 : f32
    %16 = vector.broadcast %cst_15 : f32 to vector<4x256xf32>
    %17 = arith.maximumf %15, %16 : vector<4x256xf32>
    %18 = vector.broadcast %1 : vector<1x256xf32> to vector<4x256xf32>
    %19 = arith.mulf %17, %18 : vector<4x256xf32>
    %c8 = arith.constant 8 : index
    %c0_16 = arith.constant 0 : index
    %20 = vector.load %arg7[%c8, %c0_16] : memref<36x256xf32, #tpu.memory_space<vmem>>, vector<4x256xf32>
    tpu.vector_store %arg7[%c8, %c0_16], %19 {strides = array<i32>} : memref<36x256xf32, #tpu.memory_space<vmem>>, vector<4x256xf32>,
    %c0_17 = arith.constant 0 : index
    %c0_18 = arith.constant 0 : index
    %c32 = arith.constant 32 : index
    %21 = vector.load %arg1[%c0_17, %c0_18, %c32] : memref<1x4x324xf32, #tpu.memory_space<vmem>>, vector<1x4x256xf32>
    %22 = vector.shape_cast %21 : vector<1x4x256xf32> to vector<4x256xf32>
    %cst_19 = arith.constant 0.000000e+00 : f32
    %23 = vector.broadcast %cst_19 : f32 to vector<4x256xf32>
    %24 = arith.maximumf %22, %23 : vector<4x256xf32>
    %25 = vector.broadcast %0 : vector<1x256xf32> to vector<4x256xf32>
    %26 = arith.mulf %24, %25 : vector<4x256xf32>
    %c12 = arith.constant 12 : index
    %c0_20 = arith.constant 0 : index
    %27 = vector.load %arg7[%c12, %c0_20] : memref<36x256xf32, #tpu.memory_space<vmem>>, vector<4x256xf32>
    tpu.vector_store %arg7[%c12, %c0_20], %26 {strides = array<i32>} : memref<36x256xf32, #tpu.memory_space<vmem>>, vector<4x256xf32>,
    %c0_21 = arith.constant 0 : index
    %c0_22 = arith.constant 0 : index
    %c34 = arith.constant 34 : index
    %28 = vector.load %arg1[%c0_21, %c0_22, %c34] : memref<1x4x324xf32, #tpu.memory_space<vmem>>, vector<1x4x256xf32>
    %29 = vector.shape_cast %28 : vector<1x4x256xf32> to vector<4x256xf32>
    %cst_23 = arith.constant 0.000000e+00 : f32
    %30 = vector.broadcast %cst_23 : f32 to vector<4x256xf32>
    %31 = arith.maximumf %29, %30 : vector<4x256xf32>
    %c16 = arith.constant 16 : index
    %c0_24 = arith.constant 0 : index
    %32 = vector.load %arg7[%c16, %c0_24] : memref<36x256xf32, #tpu.memory_space<vmem>>, vector<4x256xf32>
    tpu.vector_store %arg7[%c16, %c0_24], %31 {strides = array<i32>} : memref<36x256xf32, #tpu.memory_space<vmem>>, vector<4x256xf32>,
    %c0_25 = arith.constant 0 : index
    %c0_26 = arith.constant 0 : index
    %c36 = arith.constant 36 : index
    %33 = vector.load %arg1[%c0_25, %c0_26, %c36] : memref<1x4x324xf32, #tpu.memory_space<vmem>>, vector<1x4x256xf32>
    %34 = vector.shape_cast %33 : vector<1x4x256xf32> to vector<4x256xf32>
    %cst_27 = arith.constant 0.000000e+00 : f32
    %35 = vector.broadcast %cst_27 : f32 to vector<4x256xf32>
    %36 = arith.maximumf %34, %35 : vector<4x256xf32>
    %37 = vector.broadcast %1 : vector<1x256xf32> to vector<4x256xf32>
    %38 = arith.mulf %36, %37 : vector<4x256xf32>
    %c20 = arith.constant 20 : index
    %c0_28 = arith.constant 0 : index
    %39 = vector.load %arg7[%c20, %c0_28] : memref<36x256xf32, #tpu.memory_space<vmem>>, vector<4x256xf32>
    tpu.vector_store %arg7[%c20, %c0_28], %38 {strides = array<i32>} : memref<36x256xf32, #tpu.memory_space<vmem>>, vector<4x256xf32>,
    %c0_29 = arith.constant 0 : index
    %c0_30 = arith.constant 0 : index
    %c64 = arith.constant 64 : index
    %40 = vector.load %arg1[%c0_29, %c0_30, %c64] : memref<1x4x324xf32, #tpu.memory_space<vmem>>, vector<1x4x256xf32>
    %41 = vector.shape_cast %40 : vector<1x4x256xf32> to vector<4x256xf32>
    %cst_31 = arith.constant 0.000000e+00 : f32
    %42 = vector.broadcast %cst_31 : f32 to vector<4x256xf32>
    %43 = arith.maximumf %41, %42 : vector<4x256xf32>
    %44 = vector.broadcast %0 : vector<1x256xf32> to vector<4x256xf32>
    %45 = arith.mulf %43, %44 : vector<4x256xf32>
    %c24 = arith.constant 24 : index
    %c0_32 = arith.constant 0 : index
    %46 = vector.load %arg7[%c24, %c0_32] : memref<36x256xf32, #tpu.memory_space<vmem>>, vector<4x256xf32>
    tpu.vector_store %arg7[%c24, %c0_32], %45 {strides = array<i32>} : memref<36x256xf32, #tpu.memory_space<vmem>>, vector<4x256xf32>,
    %c0_33 = arith.constant 0 : index
    %c0_34 = arith.constant 0 : index
    %c66 = arith.constant 66 : index
    %47 = vector.load %arg1[%c0_33, %c0_34, %c66] : memref<1x4x324xf32, #tpu.memory_space<vmem>>, vector<1x4x256xf32>
    %48 = vector.shape_cast %47 : vector<1x4x256xf32> to vector<4x256xf32>
    %cst_35 = arith.constant 0.000000e+00 : f32
    %49 = vector.broadcast %cst_35 : f32 to vector<4x256xf32>
    %50 = arith.maximumf %48, %49 : vector<4x256xf32>
    %c28 = arith.constant 28 : index
    %c0_36 = arith.constant 0 : index
    %51 = vector.load %arg7[%c28, %c0_36] : memref<36x256xf32, #tpu.memory_space<vmem>>, vector<4x256xf32>
    tpu.vector_store %arg7[%c28, %c0_36], %50 {strides = array<i32>} : memref<36x256xf32, #tpu.memory_space<vmem>>, vector<4x256xf32>,
    %c0_37 = arith.constant 0 : index
    %c0_38 = arith.constant 0 : index
    %c68 = arith.constant 68 : index
    %52 = vector.load %arg1[%c0_37, %c0_38, %c68] : memref<1x4x324xf32, #tpu.memory_space<vmem>>, vector<1x4x256xf32>
    %53 = vector.shape_cast %52 : vector<1x4x256xf32> to vector<4x256xf32>
    %cst_39 = arith.constant 0.000000e+00 : f32
    %54 = vector.broadcast %cst_39 : f32 to vector<4x256xf32>
    %55 = arith.maximumf %53, %54 : vector<4x256xf32>
    %56 = vector.broadcast %1 : vector<1x256xf32> to vector<4x256xf32>
    %57 = arith.mulf %55, %56 : vector<4x256xf32>
    %c32_40 = arith.constant 32 : index
    %c0_41 = arith.constant 0 : index
    %58 = vector.load %arg7[%c32_40, %c0_41] : memref<36x256xf32, #tpu.memory_space<vmem>>, vector<4x256xf32>
    tpu.vector_store %arg7[%c32_40, %c0_41], %57 {strides = array<i32>} : memref<36x256xf32, #tpu.memory_space<vmem>>, vector<4x256xf32>,
    %c0_42 = arith.constant 0 : index
    %c0_43 = arith.constant 0 : index
    %59 = vector.load %arg2[%c0_42, %c0_43] : memref<8x36xf32, #tpu.memory_space<vmem>>, vector<8x36xf32>
    %c0_44 = arith.constant 0 : index
    %c0_45 = arith.constant 0 : index
    %60 = vector.load %arg7[%c0_44, %c0_45] : memref<36x256xf32, #tpu.memory_space<vmem>>, vector<36x256xf32>
    %cst_46 = arith.constant dense<0.000000e+00> : vector<8x256xf32>
    %61 = tpu.matmul %59, %60, %cst_46 {dimension_numbers = #tpu.dot_dimension_numbers<[1], [0], [0], [1], [0, 0, 1, 1], [], []>} : vector<8x36xf32>, vector<36x256xf32>, vector<8x256xf32> -> vector<8x256xf32>
    %c0_47 = arith.constant 0 : index
    %c0_48 = arith.constant 0 : index
    %62 = vector.load %arg4[%c0_47, %c0_48] : memref<8x1xf32, #tpu.memory_space<vmem>>, vector<8x1xf32>
    %63 = vector.broadcast %62 : vector<8x1xf32> to vector<8x256xf32>
    %64 = arith.mulf %61, %63 : vector<8x256xf32>
    %c0_49 = arith.constant 0 : index
    %c0_50 = arith.constant 0 : index
    %65 = vector.load %arg5[%c0_49, %c0_50] : memref<8x1xf32, #tpu.memory_space<vmem>>, vector<8x1xf32>
    %66 = vector.broadcast %65 : vector<8x1xf32> to vector<8x256xf32>
    %67 = arith.addf %64, %66 : vector<8x256xf32>
    %c0_51 = arith.constant 0 : index
    %c0_52 = arith.constant 0 : index
    %c0_53 = arith.constant 0 : index
    %68 = vector.load %arg6[%c0_51, %c0_52, %c0_53] : memref<1x8x256xf32, #tpu.memory_space<vmem>>, vector<1x8x256xf32>
    %69 = vector.shape_cast %68 : vector<1x8x256xf32> to vector<8x256xf32>
    %70 = vector.shape_cast %67 : vector<8x256xf32> to vector<1x8x256xf32>
    tpu.vector_store %arg6[%c0_51, %c0_52, %c0_53], %70 {strides = array<i32>} : memref<1x8x256xf32, #tpu.memory_space<vmem>>, vector<1x8x256xf32>,
    return
  }
  func.func @transform_0(%arg0: i32) -> (i32, i32, i32) {
    %c0_i32 = arith.constant 0 : i32
    %c0_i32_0 = arith.constant 0 : i32
    %c0_i32_1 = arith.constant 0 : i32
    return %arg0, %c0_i32, %c0_i32_0 : i32, i32, i32
  }
  func.func @transform_1(%arg0: i32) -> (i32, i32) {
    %c0_i32 = arith.constant 0 : i32
    %c0_i32_0 = arith.constant 0 : i32
    %c0_i32_1 = arith.constant 0 : i32
    return %c0_i32, %c0_i32_0 : i32, i32
  }
  func.func @transform_2(%arg0: i32) -> (i32, i32) {
    %c0_i32 = arith.constant 0 : i32
    %c0_i32_0 = arith.constant 0 : i32
    %c0_i32_1 = arith.constant 0 : i32
    return %c0_i32, %c0_i32_0 : i32, i32
  }
  func.func @transform_3(%arg0: i32) -> (i32, i32) {
    %c0_i32 = arith.constant 0 : i32
    %c0_i32_0 = arith.constant 0 : i32
    %c0_i32_1 = arith.constant 0 : i32
    return %c0_i32, %c0_i32_0 : i32, i32
  }
  func.func @transform_4(%arg0: i32) -> (i32, i32) {
    %c0_i32 = arith.constant 0 : i32
    %c0_i32_0 = arith.constant 0 : i32
    %c0_i32_1 = arith.constant 0 : i32
    return %c0_i32, %c0_i32_0 : i32, i32
  }
  func.func @transform_5(%arg0: i32) -> (i32, i32, i32) {
    %c0_i32 = arith.constant 0 : i32
    %c0_i32_0 = arith.constant 0 : i32
    %c0_i32_1 = arith.constant 0 : i32
    return %arg0, %c0_i32, %c0_i32_0 : i32, i32, i32
  }
}

</mosaic_0001>

<llo_original>
// kernel: tpu_custom_call.1
$region0: #{tpu_custom_call.1}
  #allocation0 [shape = 'u32[]', space=smem, size = 0x4, offset = 0x4, fixed_abs, tag = 'smem constant byte address 0x4 - core index']
  #allocation1 [shape = 'u32[144,128]{1,0:T(1,128)}', space=vmem, size = 0x12000, scoped, tag = 'internal scratch']
  #allocation2 [shape = 'f32[36,256]{1,0:T(8,128)}', space=vmem, size = 0xa000, scoped, tag = 'scratch operand']
  %s0 = inlined_call_operand.hbm [shape: f32[2,4,324], index: 0, kind: input, shape index: {}]
  %s1 = inlined_call_operand.vmem [shape: f32[8,36], index: 1, kind: input, shape index: {}]
  %s2 = inlined_call_operand.vmem [shape: f32[3,256], index: 2, kind: input, shape index: {}]
  %s3 = inlined_call_operand.vmem [shape: f32[8,1], index: 3, kind: input, shape index: {}]
  %s4 = inlined_call_operand.vmem [shape: f32[8,1], index: 4, kind: input, shape index: {}]
  %s5 = inlined_call_operand.hbm [shape: f32[2,8,256], index: 5, kind: output, shape index: {}]
  %s6 = sld [smem:[#allocation0]]
  $region57: #{tpu_custom_call.1} parent=0
    _
  %s8 = ssub.s32 1, %s6
  %s9 = scalar_select 0, %s8, %s6
  $region1: #{tpu_custom_call.1} parent=0
    #allocation3 [shape = 'u8[12288]{0}', space=vmem, size = 0x3000, scoped, tag = 'input window, operand 0']
    #allocation4 [shape = 's32[2]{0}', space=sflag, size = 0x8, scoped, tag = 'scoped memory for tpu_custom_call.1']
    #allocation5 [shape = 's32[2]{0}', space=sflag, size = 0x8, scoped, tag = 'scoped memory for tpu_custom_call.1']
    #allocation6 [shape = 'u8[16384]{0}', space=vmem, size = 0x4000, scoped, tag = 'output window, operand 0']
    %10 = vsyncpa [#allocation4], 0
    %s11 = scalar_lea.sflag [#allocation4], 1
    %12 = vsyncpa %s11, 0
    %13 = vsyncpa [#allocation5], 0
    %s14 = scalar_lea.sflag [#allocation5], 1
    %15 = vsyncpa %s14, 0
    loop: start=0, step=1, limit=4
    $region2: #{tpu_custom_call.1} parent=1 // loop_pre_header
      _
    $region3: #{tpu_custom_call.1} parent=1 // loop_header
      %s17 = sphi 0, %s21
      %p18 = scmp.ge.s32.totalorder %s17, 4
      %s27 = sphi 0, %s29
      %s30 = sphi 0, %s27
      %s31 = sphi 0, %s30
      %s47 = sphi 0, %s31
      %s51 = sphi 0, %s51
      %s53 = sphi 0, %s51
      %s54 = sphi 0, %s53
      %s68 = sphi 0, %s54
      %s72 = sphi 0, %s72
      %s74 = sphi 0, %s72
      %s75 = sphi 0, %s74
      %s89 = sphi 0, %s75
      %s93 = sphi 0, %s93
      %s95 = sphi 0, %s93
      %s96 = sphi 0, %s95
      %s110 = sphi 0, %s96
      %s114 = sphi 0, %s114
      %s116 = sphi 0, %s114
      %s117 = sphi 0, %s116
      %s131 = sphi 0, %s117
      %s137 = sphi 0, %s139
      %s140 = sphi 0, %s137
      %s141 = sphi 0, %s140
      %s157 = sphi 0, %s141
    $region4: #{tpu_custom_call.1} parent=1 // loop_header_branch
      %20 = sbr.rel (%p18) target = $region8
    $region5: #{tpu_custom_call.1} parent=1 // loop_body
      %s22 = ssub.s32 %s17, 1
      %s23 = ssub.s32 %s17, 2
      %s24 = sadd.s32 %s17, 1
      %s25 = ssub.s32 %s17, %s24
      %p26 = scmp.eq.s32.totalorder %s25, 0
      %s28 = sadd.s32 %s27, 1
      %s29 = scalar_select %p26, %s27, %s28
      %p32 = pneg %p26
      %p33 = scmp.eq.s32.totalorder %s17, 1
      %p34 = por %p32, %p33
      %p35 = scmp.ne.s32.totalorder %s27, %s30
      %p36 = scmp.eq.s32.totalorder %s17, 0
      %p37 = por %p35, %p36
      %p38 = scmp.ne.s32.totalorder %s27, %s30
      %p39 = scmp.eq.s32.totalorder %s22, 1
      %p40 = por %p38, %p39
      %p41 = scmp.ne.s32.totalorder %s30, %s31
      %p42 = scmp.eq.s32.totalorder %s22, 0
      %p43 = por %p41, %p42
      %p44 = scmp.ne.s32.totalorder %s30, %s31
      %p45 = scmp.eq.s32.totalorder %s23, 1
      %p46 = por %p44, %p45
      %p48 = scmp.ne.s32.totalorder %s31, %s47
      %p49 = scmp.eq.s32.totalorder %s23, 0
      %p50 = por %p48, %p49
      %s52 = sadd.s32 %s51, 1
      %p55 = scmp.eq.s32.totalorder %s17, 1
      %p56 = scmp.ne.s32.totalorder %s51, %s53
      %p57 = scmp.eq.s32.totalorder %s17, 0
      %p58 = por %p56, %p57
      %p59 = scmp.ne.s32.totalorder %s51, %s53
      %p60 = scmp.eq.s32.totalorder %s22, 1
      %p61 = por %p59, %p60
      %p62 = scmp.ne.s32.totalorder %s53, %s54
      %p63 = scmp.eq.s32.totalorder %s22, 0
      %p64 = por %p62, %p63
      %p65 = scmp.ne.s32.totalorder %s53, %s54
      %p66 = scmp.eq.s32.totalorder %s23, 1
      %p67 = por %p65, %p66
      %p69 = scmp.ne.s32.totalorder %s54, %s68
      %p70 = scmp.eq.s32.totalorder %s23, 0
      %p71 = por %p69, %p70
      %s73 = sadd.s32 %s72, 1
      %p76 = scmp.eq.s32.totalorder %s17, 1
      %p77 = scmp.ne.s32.totalorder %s72, %s74
      %p78 = scmp.eq.s32.totalorder %s17, 0
      %p79 = por %p77, %p78
      %p80 = scmp.ne.s32.totalorder %s72, %s74
      %p81 = scmp.eq.s32.totalorder %s22, 1
      %p82 = por %p80, %p81
      %p83 = scmp.ne.s32.totalorder %s74, %s75
      %p84 = scmp.eq.s32.totalorder %s22, 0
      %p85 = por %p83, %p84
      %p86 = scmp.ne.s32.totalorder %s74, %s75
      %p87 = scmp.eq.s32.totalorder %s23, 1
      %p88 = por %p86, %p87
      %p90 = scmp.ne.s32.totalorder %s75, %s89
      %p91 = scmp.eq.s32.totalorder %s23, 0
      %p92 = por %p90, %p91
      %s94 = sadd.s32 %s93, 1
      %p97 = scmp.eq.s32.totalorder %s17, 1
      %p98 = scmp.ne.s32.totalorder %s93, %s95
      %p99 = scmp.eq.s32.totalorder %s17, 0
      %p100 = por %p98, %p99
      %p101 = scmp.ne.s32.totalorder %s93, %s95
      %p102 = scmp.eq.s32.totalorder %s22, 1
      %p103 = por %p101, %p102
      %p104 = scmp.ne.s32.totalorder %s95, %s96
      %p105 = scmp.eq.s32.totalorder %s22, 0
      %p106 = por %p104, %p105
      %p107 = scmp.ne.s32.totalorder %s95, %s96
      %p108 = scmp.eq.s32.totalorder %s23, 1
      %p109 = por %p107, %p108
      %p111 = scmp.ne.s32.totalorder %s96, %s110
      %p112 = scmp.eq.s32.totalorder %s23, 0
      %p113 = por %p111, %p112
      %s115 = sadd.s32 %s114, 1
      %p118 = scmp.eq.s32.totalorder %s17, 1
      %p119 = scmp.ne.s32.totalorder %s114, %s116
      %p120 = scmp.eq.s32.totalorder %s17, 0
      %p121 = por %p119, %p120
      %p122 = scmp.ne.s32.totalorder %s114, %s116
      %p123 = scmp.eq.s32.totalorder %s22, 1
      %p124 = por %p122, %p123
      %p125 = scmp.ne.s32.totalorder %s116, %s117
      %p126 = scmp.eq.s32.totalorder %s22, 0
      %p127 = por %p125, %p126
      %p128 = scmp.ne.s32.totalorder %s116, %s117
      %p129 = scmp.eq.s32.totalorder %s23, 1
      %p130 = por %p128, %p129
      %p132 = scmp.ne.s32.totalorder %s117, %s131
      %p133 = scmp.eq.s32.totalorder %s23, 0
      %p134 = por %p132, %p133
      %s135 = ssub.s32 %s17, %s24
      %p136 = scmp.eq.s32.totalorder %s135, 0
      %s138 = sadd.s32 %s137, 1
      %s139 = scalar_select %p136, %s137, %s138
      %p142 = pneg %p136
      %p143 = scmp.eq.s32.totalorder %s17, 1
      %p144 = por %p142, %p143
      %p145 = scmp.ne.s32.totalorder %s137, %s140
      %p146 = scmp.eq.s32.totalorder %s17, 0
      %p147 = por %p145, %p146
      %p148 = scmp.ne.s32.totalorder %s137, %s140
      %p149 = scmp.eq.s32.totalorder %s22, 1
      %p150 = por %p148, %p149
      %p151 = scmp.ne.s32.totalorder %s140, %s141
      %p152 = scmp.eq.s32.totalorder %s22, 0
      %p153 = por %p151, %p152
      %p154 = scmp.ne.s32.totalorder %s140, %s141
      %p155 = scmp.eq.s32.totalorder %s23, 1
      %p156 = por %p154, %p155
      %p158 = scmp.ne.s32.totalorder %s141, %s157
      %p159 = scmp.eq.s32.totalorder %s23, 0
      %p160 = por %p158, %p159
      %p161 = scmp.le.s32.totalorder 1, %s17
      %p162 = scmp.lt.s32.totalorder %s17, 3
      %p163 = pnand %p161, %p162
      %p164 = pneg %p163
      // Predicated region
      $region9: #{tpu_custom_call.1} parent=5 // pred_check
        _
      $region10: #{tpu_custom_call.1} parent=5 // pred_check_branch
        %166 = sbr.rel (%p163) target = $region12
      $region11: #{tpu_custom_call.1} parent=5 // pred_region
        %s167 = ssub.s32 %s17, 1
        // Predicated region
        $region13: #{tpu_custom_call.1} parent=11 // pred_check
          %p168 = pneg %p64
        $region14: #{tpu_custom_call.1} parent=11 // pred_check_branch
          %170 = sbr.rel (%p168) target = $region16
        $region15: #{tpu_custom_call.1} parent=11 // pred_region
          _
        $region16: #{tpu_custom_call.1} parent=11 // pred_fallthru
          _
        // Predicated region
        $region17: #{tpu_custom_call.1} parent=11 // pred_check
          %p171 = pneg %p85
        $region18: #{tpu_custom_call.1} parent=11 // pred_check_branch
          %173 = sbr.rel (%p171) target = $region20
        $region19: #{tpu_custom_call.1} parent=11 // pred_region
          _
        $region20: #{tpu_custom_call.1} parent=11 // pred_fallthru
          _
        // Predicated region
        $region21: #{tpu_custom_call.1} parent=11 // pred_check
          %p174 = pneg %p106
        $region22: #{tpu_custom_call.1} parent=11 // pred_check_branch
          %176 = sbr.rel (%p174) target = $region24
        $region23: #{tpu_custom_call.1} parent=11 // pred_region
          _
        $region24: #{tpu_custom_call.1} parent=11 // pred_fallthru
          _
        // Predicated region
        $region25: #{tpu_custom_call.1} parent=11 // pred_check
          %p177 = pneg %p127
        $region26: #{tpu_custom_call.1} parent=11 // pred_check_branch
          %179 = sbr.rel (%p177) target = $region28
        $region27: #{tpu_custom_call.1} parent=11 // pred_region
          _
        $region28: #{tpu_custom_call.1} parent=11 // pred_fallthru
          _
      $region12: #{tpu_custom_call.1} parent=5 // pred_fallthru
        _
      %p180 = scmp.lt.s32.totalorder %s17, 2
      // Predicated region
      $region29: #{tpu_custom_call.1} parent=5 // pred_check
        %p181 = pneg %p180
      $region30: #{tpu_custom_call.1} parent=5 // pred_check_branch
        %183 = sbr.rel (%p181) target = $region32
      $region31: #{tpu_custom_call.1} parent=5 // pred_region
        // Predicated region
        $region33: #{tpu_custom_call.1} parent=31 // pred_check
          %p184 = pneg %p37
        $region34: #{tpu_custom_call.1} parent=31 // pred_check_branch
          %186 = sbr.rel (%p184) target = $region36
        $region35: #{tpu_custom_call.1} parent=31 // pred_region
          %s187 = sand.u32 %s27, 1
          %s188 = scalar_lea.sflag [#allocation4], %s187
          %s189 = sand.u32 %s27, 1
          %s190 = smul.addr %s189, 12
          %s191 = scalar_lea.vmem [#allocation3], %s190
          %s193 = ssub.s32 192, 192
          %194 = vsyncadd %s188, %s193
          %s195 = smul.addr %s17, 3
          %s196 = smul.addr %s195, 64
          %s197 = scalar_lea.hbm %s0, %s196
          %s199 = sshll.u32 %s191, 4
          %s200 = int_to_ptr.vmem [resolvable:$true] %s199
          %202 = dma.hbm_to_vmem [thread:$0]  %s197, 192, %s200, %s188
        $region36: #{tpu_custom_call.1} parent=31 // pred_fallthru
          _
      $region32: #{tpu_custom_call.1} parent=5 // pred_fallthru
        _
      %p203 = scmp.le.s32.totalorder 1, %s17
      %p204 = scmp.lt.s32.totalorder %s17, 3
      %p205 = pnand %p203, %p204
      %p206 = pneg %p205
      // Predicated region
      $region37: #{tpu_custom_call.1} parent=5 // pred_check
        _
      $region38: #{tpu_custom_call.1} parent=5 // pred_check_branch
        %208 = sbr.rel (%p205) target = $region40
      $region39: #{tpu_custom_call.1} parent=5 // pred_region
        %s209 = ssub.s32 %s17, 1
        %s210 = sand.u32 %s30, 1
        %s211 = scalar_lea.sflag [#allocation4], %s210
        %s212 = sand.u32 %s30, 1
        %s213 = smul.addr %s212, 12
        %s214 = scalar_lea.vmem [#allocation3], %s213
        // Predicated region
        $region41: #{tpu_custom_call.1} parent=39 // pred_check
          %p215 = pneg %p43
        $region42: #{tpu_custom_call.1} parent=39 // pred_check_branch
          %217 = sbr.rel (%p215) target = $region44
        $region43: #{tpu_custom_call.1} parent=39 // pred_region
          %218 = dma.done %s211, 192
        $region44: #{tpu_custom_call.1} parent=39 // pred_fallthru
          _
        %s219 = sand.u32 %s30, 1
        %s220 = scalar_lea.sflag [#allocation4], %s219
        %s221 = sand.u32 %s30, 1
        %s222 = smul.addr %s221, 12
        %s223 = scalar_lea.vmem [#allocation3], %s222
        %p224 = pneg %p43
        %p225 = pneg %p40
        %p226 = pneg %p64
        %p227 = pneg %p61
        %p228 = pneg %p85
        %p229 = pneg %p82
        %p230 = pneg %p106
        %p231 = pneg %p103
        %p232 = pneg %p127
        %p233 = pneg %p124
        %p234 = pneg %p153
        %p235 = pneg %p150
        %s236 = sand.u32 %s140, 1
        %s237 = scalar_lea.sflag [#allocation5], %s236
        %s238 = sand.u32 %s140, 1
        %s239 = smul.addr %s238, 16
        %s240 = scalar_lea.vmem [#allocation6], %s239
        %v241 = vld [vmem:[%s2] ss:$4 sm:$0x3]
        %s242 = scalar_lea.vmem %s2, 2
        %v243 = vld [vmem:[%s242] ss:$4 sm:$0x3]
        %v244 = vld [vmem:[%s214] sm:$0xff]
        %v245 = vmax.f32 %v244, 0.0
        %v247 = vlaneseq
        %v248 = vshrl.u32 %v247, 7
        %v249 = vsub.s32 0, %v248
        %v250 = vrot.slane %v241, %v249
        %v251 = vlaneseq
        %v252 = vshrl.u32 %v251, 7
        %v253 = vsub.s32 1, %v252
        %v254 = vrot.slane %v241, %v253
        %v255 = vcombine.low %v250, %v254
        %v257 = vmul.f32 %v245, %v255
        %v259 = vcombine.high %v257, %v257
        %261 = vst [vmem:[#allocation2] sm:$0xf] %v257
        %262 = vst [vmem:[#allocation2 + $0x8] sm:$0xf] %v259
        %v263 = vld [vmem:[%s214] sm:$0xff]
        %v264 = vld [vmem:[%s214 + $0x8] sm:$0xf]
        %v265 = vmax.f32 %v263, 0.0
        %v266 = vmax.f32 %v264, 0.0
        %v269 = vcombine.low %v265, %v265
        %v270 = vcombine.low %v266, %v266
        %271 = vrot.lane.b32.xlu0 %v269, 126
        %v272 = vpop.permute.xlu0 %271
        %273 = vrot.lane.b32.xlu0 %v265, 126
        %v274 = vpop.permute.xlu0 %273
        %275 = vrot.lane.b32.xlu0 %v270, 126
        %v276 = vpop.permute.xlu0 %275
        %vm277 = vcmask 1031168
        %v278 = vsel %vm277, %v272, %v274
        %v279 = vsel %vm277, %v274, %v276
        %282 = vst [vmem:[#allocation2] sm:$0xf0] %v278
        %283 = vst [vmem:[#allocation2 + $0x8] sm:$0xf0] %v279
        %v284 = vld [vmem:[%s214] sm:$0xff]
        %v285 = vld [vmem:[%s214 + $0x8] sm:$0xf]
        %v286 = vmax.f32 %v284, 0.0
        %v287 = vmax.f32 %v285, 0.0
        %v289 = vlaneseq
        %v290 = vshrl.u32 %v289, 7
        %v291 = vsub.s32 0, %v290
        %v292 = vrot.slane %v243, %v291
        %v293 = vlaneseq
        %v294 = vshrl.u32 %v293, 7
        %v295 = vsub.s32 1, %v294
        %v296 = vrot.slane %v243, %v295
        %v297 = vcombine.low %v292, %v296
        %298 = vrot.lane.b32.xlu0 %v297, 4
        %v299 = vpop.permute.xlu0 %298
        %v300 = vrot.slane %v299, 4
        %vm301 = vcmask 31744
        %v302 = vsel %vm301, %v300, %v299
        %v305 = vmul.f32 %v286, %v302
        %v306 = vmul.f32 %v287, %v300
        %v309 = vcombine.high %v305, %v305
        %310 = vrot.lane.b32.xlu0 %v305, 124
        %v311 = vpop.permute.xlu0 %310
        %312 = vrot.lane.b32.xlu0 %v309, 124
        %v313 = vpop.permute.xlu0 %312
        %314 = vrot.lane.b32.xlu0 %v306, 124
        %v315 = vpop.permute.xlu0 %314
        %vm316 = vcmask 1014784
        %v317 = vsel %vm316, %v311, %v313
        %v318 = vsel %vm316, %v313, %v315
        %321 = vst [vmem:[#allocation2 + $0x10] sm:$0xf] %v317
        %322 = vst [vmem:[#allocation2 + $0x18] sm:$0xf] %v318
        %v323 = vld [vmem:[%s214] sm:$0xff]
        %v324 = vld [vmem:[%s214 + $0x8] sm:$0xf]
        %v325 = vmax.f32 %v323, 0.0
        %v326 = vmax.f32 %v324, 0.0
        %327 = vrot.lane.b32.xlu0 %v255, 32
        %v328 = vpop.permute.xlu0 %327
        %v329 = vrot.slane %v328, 4
        %vm330 = vcmask 261120
        %v331 = vsel %vm330, %v329, %v328
        %v334 = vmul.f32 %v325, %v331
        %v335 = vmul.f32 %v326, %v329
        %v338 = vcombine.low %v334, %v334
        %v339 = vcombine.low %v335, %v335
        %340 = vrot.lane.b32.xlu0 %v338, 96
        %v341 = vpop.permute.xlu0 %340
        %342 = vrot.lane.b32.xlu0 %v334, 96
        %v343 = vpop.permute.xlu0 %342
        %344 = vrot.lane.b32.xlu0 %v339, 96
        %v345 = vpop.permute.xlu0 %344
        %vm346 = vcmask 785408
        %v347 = vsel %vm346, %v341, %v343
        %v348 = vsel %vm346, %v343, %v345
        %351 = vst [vmem:[#allocation2 + $0x10] sm:$0xf0] %v347
        %352 = vst [vmem:[#allocation2 + $0x18] sm:$0xf0] %v348
        %v353 = vld [vmem:[%s214] sm:$0xff]
        %v354 = vld [vmem:[%s214 + $0x8] sm:$0xf]
        %v355 = vmax.f32 %v353, 0.0
        %v356 = vmax.f32 %v354, 0.0
        %v359 = vcombine.high %v355, %v355
        %360 = vrot.lane.b32.xlu0 %v355, 94
        %v361 = vpop.permute.xlu0 %360
        %362 = vrot.lane.b32.xlu0 %v359, 94
        %v363 = vpop.permute.xlu0 %362
        %364 = vrot.lane.b32.xlu0 %v356, 94
        %v365 = vpop.permute.xlu0 %364
        %vm366 = vcmask 769024
        %v367 = vsel %vm366, %v361, %v363
        %v368 = vsel %vm366, %v363, %v365
        %371 = vst [vmem:[#allocation2 + $0x20] sm:$0xf] %v367
        %372 = vst [vmem:[#allocation2 + $0x28] sm:$0xf] %v368
        %v373 = vld [vmem:[%s214] sm:$0xff]
        %v374 = vld [vmem:[%s214 + $0x8] sm:$0xf]
        %v375 = vmax.f32 %v373, 0.0
        %v376 = vmax.f32 %v374, 0.0
        %377 = vrot.lane.b32.xlu0 %v297, 36
        %v378 = vpop.permute.xlu0 %377
        %v379 = vrot.slane %v378, 4
        %vm380 = vcmask 293888
        %v381 = vsel %vm380, %v379, %v378
        %v384 = vmul.f32 %v375, %v381
        %v385 = vmul.f32 %v376, %v379
        %v388 = vcombine.low %v384, %v384
        %v389 = vcombine.low %v385, %v385
        %390 = vrot.lane.b32.xlu0 %v388, 92
        %v391 = vpop.permute.xlu0 %390
        %392 = vrot.lane.b32.xlu0 %v384, 92
        %v393 = vpop.permute.xlu0 %392
        %394 = vrot.lane.b32.xlu0 %v389, 92
        %v395 = vpop.permute.xlu0 %394
        %vm396 = vcmask 752640
        %v397 = vsel %vm396, %v391, %v393
        %v398 = vsel %vm396, %v393, %v395
        %401 = vst [vmem:[#allocation2 + $0x20] sm:$0xf0] %v397
        %402 = vst [vmem:[#allocation2 + $0x28] sm:$0xf0] %v398
        %v403 = vld [vmem:[%s214] sm:$0xff]
        %v404 = vld [vmem:[%s214 + $0x8] sm:$0xf]
        %v405 = vmax.f32 %v403, 0.0
        %v406 = vmax.f32 %v404, 0.0
        %407 = vrot.lane.b32.xlu0 %v255, 64
        %v408 = vpop.permute.xlu0 %407
        %v409 = vrot.slane %v408, 4
        %vm410 = vcmask 523264
        %v411 = vsel %vm410, %v409, %v408
        %v414 = vmul.f32 %v405, %v411
        %v415 = vmul.f32 %v406, %v409
        %v418 = vcombine.high %v414, %v414
        %419 = vrot.lane.b32.xlu0 %v414, 64
        %v420 = vpop.permute.xlu0 %419
        %421 = vrot.lane.b32.xlu0 %v418, 64
        %v422 = vpop.permute.xlu0 %421
        %423 = vrot.lane.b32.xlu0 %v415, 64
        %v424 = vpop.permute.xlu0 %423
        %v425 = vsel %vm410, %v420, %v422
        %v426 = vsel %vm410, %v422, %v424
        %429 = vst [vmem:[#allocation2 + $0x30] sm:$0xf] %v425
        %430 = vst [vmem:[#allocation2 + $0x38] sm:$0xf] %v426
        %v431 = vld [vmem:[%s214] sm:$0xff]
        %v432 = vld [vmem:[%s214 + $0x8] sm:$0xf]
        %v433 = vmax.f32 %v431, 0.0
        %v434 = vmax.f32 %v432, 0.0
        %v437 = vcombine.low %v433, %v433
        %v438 = vcombine.low %v434, %v434
        %439 = vrot.lane.b32.xlu0 %v437, 62
        %v440 = vpop.permute.xlu0 %439
        %441 = vrot.lane.b32.xlu0 %v433, 62
        %v442 = vpop.permute.xlu0 %441
        %443 = vrot.lane.b32.xlu0 %v438, 62
        %v444 = vpop.permute.xlu0 %443
        %vm445 = vcmask 506880
        %v446 = vsel %vm445, %v440, %v442
        %v447 = vsel %vm445, %v442, %v444
        %450 = vst [vmem:[#allocation2 + $0x30] sm:$0xf0] %v446
        %451 = vst [vmem:[#allocation2 + $0x38] sm:$0xf0] %v447
        %v452 = vld [vmem:[%s214] sm:$0xff]
        %v453 = vld [vmem:[%s214 + $0x8] sm:$0xf]
        %v454 = vmax.f32 %v452, 0.0
        %v455 = vmax.f32 %v453, 0.0
        %456 = vrot.lane.b32.xlu0 %v297, 68
        %v457 = vpop.permute.xlu0 %456
        %v458 = vrot.slane %v457, 4
        %vm459 = vcmask 556032
        %v460 = vsel %vm459, %v458, %v457
        %v463 = vmul.f32 %v454, %v460
        %v464 = vmul.f32 %v455, %v458
        %v467 = vcombine.high %v463, %v463
        %468 = vrot.lane.b32.xlu0 %v463, 60
        %v469 = vpop.permute.xlu0 %468
        %470 = vrot.lane.b32.xlu0 %v467, 60
        %v471 = vpop.permute.xlu0 %470
        %472 = vrot.lane.b32.xlu0 %v464, 60
        %v473 = vpop.permute.xlu0 %472
        %vm474 = vcmask 490496
        %v475 = vsel %vm474, %v469, %v471
        %v476 = vsel %vm474, %v471, %v473
        %479 = vst [vmem:[#allocation2 + $0x40] sm:$0xf] %v475
        %480 = vst [vmem:[#allocation2 + $0x48] sm:$0xf] %v476
        %v481 = vld [vmem:[%s1] sm:$0xff]
        %v482 = vld [vmem:[#allocation2] sm:$0xff]
        %v483 = vld [vmem:[#allocation2 + $0x8] sm:$0xff]
        %v484 = vld [vmem:[#allocation2 + $0x10] sm:$0xff]
        %v485 = vld [vmem:[#allocation2 + $0x18] sm:$0xff]
        %v486 = vld [vmem:[#allocation2 + $0x20] sm:$0xff]
        %v487 = vld [vmem:[#allocation2 + $0x28] sm:$0xff]
        %v488 = vld [vmem:[#allocation2 + $0x30] sm:$0xff]
        %v489 = vld [vmem:[#allocation2 + $0x38] sm:$0xff]
        %v490 = vld [vmem:[#allocation2 + $0x40] sm:$0xf]
        %v491 = vld [vmem:[#allocation2 + $0x48] sm:$0xf]
        %v493 = vsel %vm380, %v481, 0
        %vm495 = vcmask 1043456
        %v497 = vsel %vm495, %v490, 0
        %v500 = vsel %vm495, %v491, 0
        %502 = vmatprep.subr.mxu0 %v483
        %503 = vmatpush1.msra.mxu0 %v482
        %504 = vmatprep.subr.mxu0 %v485
        %505 = vmatpush1.msra.mxu0 %v484
        %506 = vmatprep.subr.mxu0 %v487
        %507 = vmatpush1.msra.mxu0 %v486
        %508 = vmatprep.subr.mxu0 %v489
        %509 = vmatpush1.msra.mxu0 %v488
        %510 = vmatprep.subr.mxu0 %v500
        %511 = vmatpush1.msra.mxu0 %v497
        %512 = vmatprep.subr.mxu0 0.0
        %513 = vmatpush1.msra.mxu0 0.0
        %514 = vmatprep.subr.mxu0 0.0
        %515 = vmatpush1.msra.mxu0 0.0
        %516 = vmatprep.subr.mxu0 0.0
        %517 = vmatpush1.msra.mxu0 0.0
        %518 = vmatprep.subr.mxu0 0.0
        %519 = vmatpush1.msra.mxu0 0.0
        %520 = vmatprep.subr.mxu0 0.0
        %521 = vmatpush1.msra.mxu0 0.0
        %522 = vmatprep.subr.mxu0 0.0
        %523 = vmatpush1.msra.mxu0 0.0
        %524 = vmatprep.subr.mxu0 0.0
        %525 = vmatpush1.msra.mxu0 0.0
        %526 = vmatprep.subr.mxu0 0.0
        %527 = vmatpush1.msra.mxu0 0.0
        %528 = vmatprep.subr.mxu0 0.0
        %529 = vmatpush1.msra.mxu0 0.0
        %530 = vmatprep.subr.mxu0 0.0
        %531 = vmatpush1.msra.mxu0 0.0
        %532 = vmatprep.subr.mxu0 0.0
        %533 = vmatpush1.msra.mxu0 0.0
        %534 = vmatprep.subr.mxu0 0.0
        %535 = vmatpush1.msra.mxu0 0.0
        %536 = vmatprep.subr.mxu0 0.0
        %537 = vmatpush1.msra.mxu0 0.0
        %538 = vmatprep.subr.mxu0 0.0
        %539 = vmatpush1.msra.mxu0 0.0
        %540 = vmatprep.subr.mxu0 0.0
        %541 = vmatpush1.msra.mxu0 0.0
        %542 = vmatprep.subr.mxu0 0.0
        %543 = vmatpush1.msra.mxu0 0.0
        %544 = vmatprep.subr.mxu0 0.0
        %545 = vmatpush1.msra.mxu0 0.0
        %546 = vmatprep.subr.mxu0 0.0
        %547 = vmatpush1.msra.mxu0 0.0
        %548 = vmatprep.subr.mxu0 0.0
        %549 = vmatpush1.msra.mxu0 0.0
        %550 = vmatprep.subr.mxu0 0.0
        %551 = vmatpush1.msra.mxu0 0.0
        %552 = vmatprep.subr.mxu0 0.0
        %553 = vmatpush1.msra.mxu0 0.0
        %554 = vmatprep.subr.mxu0 0.0
        %555 = vmatpush1.msra.mxu0 0.0
        %556 = vmatprep.subr.mxu0 0.0
        %557 = vmatpush1.msra.mxu0 0.0
        %558 = vmatprep.subr.mxu0 0.0
        %559 = vmatpush1.msra.mxu0 0.0
        %560 = vmatprep.subr.mxu0 0.0
        %561 = vmatpush1.msra.mxu0 0.0
        %562 = vmatprep.subr.mxu0 0.0
        %563 = vmatpush1.msra.mxu0 0.0
        %564 = vmatprep.subr.mxu0 0.0
        %565 = vmatpush1.msra.mxu0 0.0
        %566 = vmatprep.mubr.f32.mxu0 0.0
        %567 = vmatmul.mubr.f32.gmra.mrb[0].mxu0 %v493
        %v568 = vpop.f32.mrb[0].mxu0
        %v569 = vadd.f32 0.0, %v568
        %v570 = vpop.f32.mrb[0].mxu0
        %v571 = vadd.f32 0.0, %v570
        %572 = vdwg.mxu0
        %v573 = vld [vmem:[%s3] sm:$0xff]
        %575 = vset.pattern.permute.xlu0 0
        %576 = vperm.xlu0 %575, %v573
        %v577 = vpop.permute.xlu0 %576
        %v579 = vmul.f32 %v569, %v577
        %v580 = vmul.f32 %v571, %v577
        %v581 = vld [vmem:[%s4] sm:$0xff]
        %583 = vset.pattern.permute.xlu0 0
        %584 = vperm.xlu0 %583, %v581
        %v585 = vpop.permute.xlu0 %584
        %v587 = vadd.f32 %v579, %v585
        %v588 = vadd.f32 %v580, %v585
        %589 = vst [vmem:[%s240] sm:$0xff] %v587
        %590 = vst [vmem:[%s240 + $0x8] sm:$0xff] %v588
        %s591 = sand.u32 %s140, 1
        %s592 = scalar_lea.sflag [#allocation5], %s591
        %s593 = sand.u32 %s140, 1
        %s594 = smul.addr %s593, 16
        %s595 = scalar_lea.vmem [#allocation6], %s594
        // Predicated region
        $region45: #{tpu_custom_call.1} parent=39 // pred_check
          %p596 = pneg %p150
        $region46: #{tpu_custom_call.1} parent=39 // pred_check_branch
          %598 = sbr.rel (%p596) target = $region48
        $region47: #{tpu_custom_call.1} parent=39 // pred_region
          %s600 = ssub.s32 256, 256
          %601 = vsyncadd %s592, %s600
          %s602 = smul.addr %s22, 2
          %s603 = smul.addr %s602, 128
          %s604 = scalar_lea.hbm %s5, %s603
          %s606 = sshll.u32 %s595, 4
          %s607 = int_to_ptr.vmem [resolvable:$true] %s606
          %609 = dma.vmem_to_hbm [thread:$0]  %s607, 256, %s604, %s592
        $region48: #{tpu_custom_call.1} parent=39 // pred_fallthru
          _
      $region40: #{tpu_custom_call.1} parent=5 // pred_fallthru
        _
      %p610 = scmp.le.s32.totalorder 2, %s17
      // Predicated region
      $region49: #{tpu_custom_call.1} parent=5 // pred_check
        %p611 = pneg %p610
      $region50: #{tpu_custom_call.1} parent=5 // pred_check_branch
        %613 = sbr.rel (%p611) target = $region52
      $region51: #{tpu_custom_call.1} parent=5 // pred_region
        %s614 = ssub.s32 %s17, 2
        // Predicated region
        $region53: #{tpu_custom_call.1} parent=51 // pred_check
          %p615 = pneg %p156
        $region54: #{tpu_custom_call.1} parent=51 // pred_check_branch
          %617 = sbr.rel (%p615) target = $region56
        $region55: #{tpu_custom_call.1} parent=51 // pred_region
          %s618 = sand.u32 %s141, 1
          %s619 = scalar_lea.sflag [#allocation5], %s618
          %s620 = sand.u32 %s141, 1
          %s621 = smul.addr %s620, 16
          %s622 = scalar_lea.vmem [#allocation6], %s621
          %623 = dma.done %s619, 256
        $region56: #{tpu_custom_call.1} parent=51 // pred_fallthru
          _
      $region52: #{tpu_custom_call.1} parent=5 // pred_fallthru
        _
    $region6: #{tpu_custom_call.1} parent=1 // loop_footer
      %s21 = sadd.s32 1, %s17
    $region7: #{tpu_custom_call.1} parent=1 // loop_footer_branch
      %16 = sbr.rel target = $region3
    $region8: #{tpu_custom_call.1} parent=1 // loop_exit
      _
    %624 = vsyncpa [#allocation4], 1
    %s625 = scalar_lea.sflag [#allocation4], 1
    %626 = vsyncpa %s625, 1
    %627 = vsyncpa [#allocation5], 1
    %s628 = scalar_lea.sflag [#allocation5], 1
    %629 = vsyncpa %s628, 1

</llo_original>
